<compile_context>
chip_gen: v5e
topology: v5e:2x2
jax: 0.10.0
libtpu: 0.0.40
codegen_flags: <defaults>
</compile_context>

<pallas_src>
import functools
import math

import jax
import jax.numpy as jnp
from jax import lax
from jax.experimental import pallas as pl
from jax.experimental.pallas import tpu as pltpu


def _round_up(x, m):
    return ((x + m - 1) // m) * m


# Rows of the packed f32 parameter slab, shape (8, P):
#   0: fc1 bias  (pre_norm beta folded in)
#   1: fc2 bias  (LN1 beta folded in)
#   2: fc3 weight vector (LN2 gamma folded in)
#   3: fc3 bias  (scalar at column 0; LN2 beta folded in)
_ROW_B1, _ROW_B2, _ROW_W3, _ROW_B3 = 0, 1, 2, 3
_EPS = 1e-5  # PyTorch LayerNorm default


# -----------------------------------------------------------------------------
# Pallas kernel: one batch tile of the full Critic forward.
# -----------------------------------------------------------------------------
def critic_kernel(x_ref, prm_ref, w1_ref, w2_ref, out_ref, *, sub):
    d_h = w1_ref.shape[-1]
    n_sub = x_ref.shape[0] // sub  # static trip count

    # Slab rows hoisted out of the inner loop (loop-invariant loads).
    b1 = prm_ref[_ROW_B1:_ROW_B1 + 1, :d_h]
    b2 = prm_ref[_ROW_B2:_ROW_B2 + 1, :d_h]
    w3 = prm_ref[_ROW_W3:_ROW_W3 + 1, :d_h]
    b3 = prm_ref[_ROW_B3:_ROW_B3 + 1, 0:1]

    def norm(v):
        # One-pass variance: both reductions are independent -> back-to-back XLU.
        mu = jnp.mean(v, axis=-1, keepdims=True)
        ms = jnp.mean(v * v, axis=-1, keepdims=True)
        return (v - mu) * lax.rsqrt(ms - mu * mu + _EPS)

    def body(i, carry):
        r = pl.multiple_of(i * sub, sub)
        x = x_ref[pl.ds(r, sub), :].astype(jnp.float32)

        # pre_norm (affine folded into fc1 on the host)
        x = norm(x)

        # fc1 -> ReLU -> LN1   (bf16 MXU operands, f32 accumulate)
        h = jnp.dot(x.astype(jnp.bfloat16), w1_ref[...],
                    preferred_element_type=jnp.float32)
        h = norm(jnp.maximum(h + b1, 0.0))

        # fc2 -> ReLU -> LN2
        h = jnp.dot(h.astype(jnp.bfloat16), w2_ref[...],
                    preferred_element_type=jnp.float32)
        h = norm(jnp.maximum(h + b2, 0.0))

        # fc3: VPU multiply + lane reduce instead of a (sub,H)@(H,1) MXU matmul.
        v = jnp.sum(h * w3, axis=-1, keepdims=True) + b3
        out_ref[pl.ds(r, sub), :] = v
        return carry

    lax.fori_loop(0, n_sub, body, 0, unroll=True)


# -----------------------------------------------------------------------------
# Host-side wrapper: batch grid, VMEM-resident weights, >=2 grid steps for v7x.
# -----------------------------------------------------------------------------
def critic_forward(x, params, *, sub=128, max_tile=1024):
    B, D_in = x.shape
    prm, w1, w2 = params["slab"], params["w1"], params["w2"]

    # Inner sub-chunk: bounds vreg pressure; don't over-pad tiny batches.
    sub = min(sub, _round_up(B, 8))
    Bp = _round_up(B, sub)
    n_sub_total = Bp // sub

    # Batch tile: as large as max_tile allows (few grid steps), but guarantee
    # >= 2 grid steps whenever the batch has >= 2 sub-chunks so the "parallel"
    # grid axis can shard across v7x's two TensorCores.
    subs_per_tile = min(max(max_tile // sub, 1), n_sub_total)
    if n_sub_total >= 2 and subs_per_tile == n_sub_total:
        subs_per_tile = n_sub_total // 2
    TB = subs_per_tile * sub

    Bp = _round_up(Bp, TB)
    if Bp != B:
        x = jnp.pad(x, ((0, Bp - B), (0, 0)))  # zero rows are LayerNorm-safe

    kernel = functools.partial(critic_kernel, sub=sub)
    out = pl.pallas_call(
        kernel,
        out_shape=jax.ShapeDtypeStruct((Bp, 1), jnp.float32),
        grid=(Bp // TB,),
        in_specs=[
            pl.BlockSpec((TB, D_in), lambda i: (i, 0)),   # x: tiled over batch
            pl.BlockSpec(prm.shape, lambda i: (0, 0)),    # packed params: resident
            pl.BlockSpec(w1.shape, lambda i: (0, 0)),     # weights: resident
            pl.BlockSpec(w2.shape, lambda i: (0, 0)),
        ],
        out_specs=pl.BlockSpec((TB, 1), lambda i: (i, 0)),
        compiler_params=pltpu.CompilerParams(
            dimension_semantics=("parallel",)),
    )(x, prm, w1, w2)
    return out[:B]


# -----------------------------------------------------------------------------
# References.
# -----------------------------------------------------------------------------
def critic_reference_f32(x, rp):
    """Original PyTorch module semantics, f32 everywhere, no folding."""
    def ln(v, g, b):
        mu = v.mean(-1, keepdims=True)
        var = ((v - mu) ** 2).mean(-1, keepdims=True)
        return (v - mu) * lax.rsqrt(var + _EPS) * g + b

    h = ln(x, rp["g_pre"], rp["be_pre"])
    h = h @ rp["w1"].T + rp["b1"]
    h = jnp.maximum(h, 0.0)
    h = ln(h, rp["g1"], rp["be1"])
    h = h @ rp["w2"].T + rp["b2"]
    h = jnp.maximum(h, 0.0)
    h = ln(h, rp["g2"], rp["be2"])
    return h @ rp["w3"].T + rp["b3"]


def critic_reference_bf16(x, kp):
    """Same folded / bf16-matmul path as the kernel (pure JAX)."""
    slab = kp["slab"]
    H = kp["w1"].shape[1]

    def norm(v):
        mu = v.mean(-1, keepdims=True)
        ms = (v * v).mean(-1, keepdims=True)
        return (v - mu) * lax.rsqrt(ms - mu * mu + _EPS)

    h = norm(x.astype(jnp.float32))
    h = jnp.dot(h.astype(jnp.bfloat16), kp["w1"],
                preferred_element_type=jnp.float32) + slab[_ROW_B1, :H]
    h = norm(jnp.maximum(h, 0.0))
    h = jnp.dot(h.astype(jnp.bfloat16), kp["w2"],
                preferred_element_type=jnp.float32) + slab[_ROW_B2, :H]
    h = norm(jnp.maximum(h, 0.0))
    return jnp.sum(h * slab[_ROW_W3, :H], axis=-1, keepdims=True) + slab[_ROW_B3, 0]


# -----------------------------------------------------------------------------
# Deterministic parameter init (orthogonal weights like nn.init.orthogonal_,
# zero biases like the module's init(); LayerNorm gamma=1, beta=0 defaults),
# then host-side folding of the LN affines into the following linear layers.
# -----------------------------------------------------------------------------
def orthogonal_weight(key, out_dim, in_dim, gain):
    n = max(out_dim, in_dim)
    a = jax.random.normal(key, (n, n), dtype=jnp.float32)
    q, r = jnp.linalg.qr(a)
    q = q * jnp.sign(jnp.diag(r))           # make decomposition unique
    return (gain * q[:out_dim, :in_dim]).astype(jnp.float32)   # (out, in)


def make_params(key, input_dim, hidden_dim):
    k1, k2, k3 = jax.random.split(key, 3)
    gain_relu = math.sqrt(2.0)              # nn.init.calculate_gain('relu')

    w1 = orthogonal_weight(k1, hidden_dim, input_dim, gain_relu)   # (H, D_in)
    w2 = orthogonal_weight(k2, hidden_dim, hidden_dim, gain_relu)  # (H, H)
    w3 = orthogonal_weight(k3, 1, hidden_dim, 1.0)                 # (1, H)
    b1 = jnp.zeros((hidden_dim,), jnp.float32)                     # init(): bias=0
    b2 = jnp.zeros((hidden_dim,), jnp.float32)
    b3 = jnp.zeros((1,), jnp.float32)
    g_pre, be_pre = jnp.ones((input_dim,)), jnp.zeros((input_dim,))
    g1, be1 = jnp.ones((hidden_dim,)), jnp.zeros((hidden_dim,))
    g2, be2 = jnp.ones((hidden_dim,)), jnp.zeros((hidden_dim,))

    # ---- fold LN affines into the following linear layer (in f32) ----
    w1t = w1.T                               # (D_in, H)
    w1f = g_pre[:, None] * w1t
    b1f = b1 + be_pre @ w1t
    w2t = w2.T                               # (H, H)
    w2f = g1[:, None] * w2t
    b2f = b2 + be1 @ w2t
    w3v = w3[0]                              # (H,)
    w3f = g2 * w3v
    b3f = b3[0] + be2 @ w3v

    # Packed (8,128)-aligned f32 parameter slab.
    P = _round_up(max(input_dim, hidden_dim), 128)
    slab = jnp.zeros((8, P), jnp.float32)
    slab = slab.at[_ROW_B1, :hidden_dim].set(b1f)
    slab = slab.at[_ROW_B2, :hidden_dim].set(b2f)
    slab = slab.at[_ROW_W3, :hidden_dim].set(w3f)
    slab = slab.at[_ROW_B3, 0].set(b3f)

    kernel_params = {
        "w1": w1f.astype(jnp.bfloat16),
        "w2": w2f.astype(jnp.bfloat16),
        "slab": slab,
    }
    ref_params = {
        "w1": w1, "b1": b1, "w2": w2, "b2": b2, "w3": w3, "b3": b3,
        "g_pre": g_pre, "be_pre": be_pre,
        "g1": g1, "be1": be1, "g2": g2, "be2": be2,
    }
    return kernel_params, ref_params


if __name__ == "__main__":
    # Small demo shapes (hidden_dim matches the module default of 128).
    # NOTE: at this size the kernel is pure fixed overhead; for production,
    # stack many env steps / actors on the batch axis of a single call.
    batch, input_dim, hidden_dim = 8, 32, 128

    key = jax.random.PRNGKey(0)
    kx, kparams = jax.random.split(key)

    x = jax.random.normal(kx, (batch, input_dim), dtype=jnp.float32)
    kernel_params, ref_params = make_params(kparams, input_dim, hidden_dim)

    values = jax.jit(critic_forward)(x, kernel_params)
    jax.block_until_ready(values)
    assert values.shape == (batch, 1)

    # (1) kernel vs. pure-JAX reference doing the identical folded/bf16 math.
    ref_bf16 = critic_reference_bf16(x, kernel_params)
    err_bf16 = float(jnp.max(jnp.abs(values - ref_bf16)))
    assert err_bf16 < 2e-3, f"max abs err vs bf16-path reference: {err_bf16}"

    # (2) kernel vs. f32 PyTorch-semantics reference (bf16 weight rounding only).
    ref_f32 = critic_reference_f32(x, ref_params)
    rel_err = float(jnp.max(jnp.abs(values - ref_f32) / (1.0 + jnp.abs(ref_f32))))
    assert rel_err < 5e-2, f"max rel err vs f32 reference: {rel_err}"

    print("KERNEL_OK")
</pallas_src>

<mosaic_0001>
module attributes {stable_mosaic.version = 11 : i64} {
  func.func @critic_kernel(%arg0: i32, %arg1: memref<8x32xf32, #tpu.memory_space<vmem>>, %arg2: memref<8x128xf32, #tpu.memory_space<vmem>>, %arg3: memref<32x128xbf16, #tpu.memory_space<vmem>>, %arg4: memref<128x128xbf16, #tpu.memory_space<vmem>>, %arg5: memref<8x1xf32, #tpu.memory_space<vmem>>) attributes {dimension_semantics = [#tpu.dimension_semantics<parallel>], iteration_bounds = array<i64: 1>, scalar_prefetch = 0 : i64, scratch_operands = 0 : i64, tpu.core_type = #tpu.core_type<tc>, window_params = [{transform_indices = @transform_0, window_bounds = array<i64: 8, 32>}, {pipeline_mode = #tpu.pipeline_mode<synchronous>, transform_indices = @transform_1, window_bounds = array<i64: 8, 128>}, {pipeline_mode = #tpu.pipeline_mode<synchronous>, transform_indices = @transform_2, window_bounds = array<i64: 32, 128>}, {pipeline_mode = #tpu.pipeline_mode<synchronous>, transform_indices = @transform_3, window_bounds = array<i64: 128, 128>}, {transform_indices = @transform_4, window_bounds = array<i64: 8, 1>}]} {
    %c0 = arith.constant 0 : index
    %c0_0 = arith.constant 0 : index
    %0 = vector.load %arg2[%c0, %c0_0] : memref<8x128xf32, #tpu.memory_space<vmem>>, vector<1x128xf32>
    %c1 = arith.constant 1 : index
    %c0_1 = arith.constant 0 : index
    %1 = vector.load %arg2[%c1, %c0_1] : memref<8x128xf32, #tpu.memory_space<vmem>>, vector<1x128xf32>
    %c2 = arith.constant 2 : index
    %c0_2 = arith.constant 0 : index
    %2 = vector.load %arg2[%c2, %c0_2] : memref<8x128xf32, #tpu.memory_space<vmem>>, vector<1x128xf32>
    %c3 = arith.constant 3 : index
    %c0_3 = arith.constant 0 : index
    %3 = vector.load %arg2[%c3, %c0_3] : memref<8x128xf32, #tpu.memory_space<vmem>>, vector<1x1xf32>
    %c0_i32 = arith.constant 0 : i32
    %c8_i32 = arith.constant 8 : i32
    %4 = arith.muli %c0_i32, %c8_i32 : i32
    %5 = tpu.assume_multiple %4, 8 : i32
    %6 = arith.index_cast %5 : i32 to index
    %c0_4 = arith.constant 0 : index
    %7 = vector.load %arg1[%6, %c0_4] : memref<8x32xf32, #tpu.memory_space<vmem>>, vector<8x32xf32>
    %cst = arith.constant dense<0.000000e+00> : vector<8xf32>
    %8 = vector.multi_reduction <add>, %7, %cst [1] : vector<8x32xf32> to vector<8xf32>
    %9 = vector.shape_cast %8 : vector<8xf32> to vector<8x1xf32>
    %cst_5 = arith.constant 3.200000e+01 : f32
    %10 = vector.broadcast %cst_5 : f32 to vector<8x1xf32>
    %11 = arith.divf %9, %10 : vector<8x1xf32>
    %12 = arith.mulf %7, %7 : vector<8x32xf32>
    %cst_6 = arith.constant dense<0.000000e+00> : vector<8xf32>
    %13 = vector.multi_reduction <add>, %12, %cst_6 [1] : vector<8x32xf32> to vector<8xf32>
    %14 = vector.shape_cast %13 : vector<8xf32> to vector<8x1xf32>
    %cst_7 = arith.constant 3.200000e+01 : f32
    %15 = vector.broadcast %cst_7 : f32 to vector<8x1xf32>
    %16 = arith.divf %14, %15 : vector<8x1xf32>
    %17 = vector.broadcast %11 : vector<8x1xf32> to vector<8x32xf32>
    %18 = arith.subf %7, %17 : vector<8x32xf32>
    %19 = arith.mulf %11, %11 : vector<8x1xf32>
    %20 = arith.subf %16, %19 : vector<8x1xf32>
    %cst_8 = arith.constant 9.99999974E-6 : f32
    %21 = vector.broadcast %cst_8 : f32 to vector<8x1xf32>
    %22 = arith.addf %20, %21 : vector<8x1xf32>
    %23 = math.rsqrt %22 : vector<8x1xf32>
    %24 = vector.broadcast %23 : vector<8x1xf32> to vector<8x32xf32>
    %25 = arith.mulf %18, %24 : vector<8x32xf32>
    %26 = arith.truncf %25 : vector<8x32xf32> to vector<8x32xbf16>
    %c0_9 = arith.constant 0 : index
    %c0_10 = arith.constant 0 : index
    %27 = vector.load %arg3[%c0_9, %c0_10] : memref<32x128xbf16, #tpu.memory_space<vmem>>, vector<32x128xbf16>
    %cst_11 = arith.constant dense<0.000000e+00> : vector<8x128xf32>
    %28 = tpu.matmul %26, %27, %cst_11 {dimension_numbers = #tpu.dot_dimension_numbers<[1], [0], [0], [1], [0, 0, 1, 1], [], []>} : vector<8x32xbf16>, vector<32x128xbf16>, vector<8x128xf32> -> vector<8x128xf32>
    %29 = vector.broadcast %0 : vector<1x128xf32> to vector<8x128xf32>
    %30 = arith.addf %28, %29 : vector<8x128xf32>
    %cst_12 = arith.constant 0.000000e+00 : f32
    %31 = vector.broadcast %cst_12 : f32 to vector<8x128xf32>
    %32 = arith.maximumf %30, %31 : vector<8x128xf32>
    %cst_13 = arith.constant dense<0.000000e+00> : vector<8xf32>
    %33 = vector.multi_reduction <add>, %32, %cst_13 [1] : vector<8x128xf32> to vector<8xf32>
    %34 = vector.shape_cast %33 : vector<8xf32> to vector<8x1xf32>
    %cst_14 = arith.constant 1.280000e+02 : f32
    %35 = vector.broadcast %cst_14 : f32 to vector<8x1xf32>
    %36 = arith.divf %34, %35 : vector<8x1xf32>
    %37 = arith.mulf %32, %32 : vector<8x128xf32>
    %cst_15 = arith.constant dense<0.000000e+00> : vector<8xf32>
    %38 = vector.multi_reduction <add>, %37, %cst_15 [1] : vector<8x128xf32> to vector<8xf32>
    %39 = vector.shape_cast %38 : vector<8xf32> to vector<8x1xf32>
    %cst_16 = arith.constant 1.280000e+02 : f32
    %40 = vector.broadcast %cst_16 : f32 to vector<8x1xf32>
    %41 = arith.divf %39, %40 : vector<8x1xf32>
    %42 = vector.broadcast %36 : vector<8x1xf32> to vector<8x128xf32>
    %43 = arith.subf %32, %42 : vector<8x128xf32>
    %44 = arith.mulf %36, %36 : vector<8x1xf32>
    %45 = arith.subf %41, %44 : vector<8x1xf32>
    %cst_17 = arith.constant 9.99999974E-6 : f32
    %46 = vector.broadcast %cst_17 : f32 to vector<8x1xf32>
    %47 = arith.addf %45, %46 : vector<8x1xf32>
    %48 = math.rsqrt %47 : vector<8x1xf32>
    %49 = vector.broadcast %48 : vector<8x1xf32> to vector<8x128xf32>
    %50 = arith.mulf %43, %49 : vector<8x128xf32>
    %51 = arith.truncf %50 : vector<8x128xf32> to vector<8x128xbf16>
    %c0_18 = arith.constant 0 : index
    %c0_19 = arith.constant 0 : index
    %52 = vector.load %arg4[%c0_18, %c0_19] : memref<128x128xbf16, #tpu.memory_space<vmem>>, vector<128x128xbf16>
    %cst_20 = arith.constant dense<0.000000e+00> : vector<8x128xf32>
    %53 = tpu.matmul %51, %52, %cst_20 {dimension_numbers = #tpu.dot_dimension_numbers<[1], [0], [0], [1], [0, 0, 1, 1], [], []>} : vector<8x128xbf16>, vector<128x128xbf16>, vector<8x128xf32> -> vector<8x128xf32>
    %54 = vector.broadcast %1 : vector<1x128xf32> to vector<8x128xf32>
    %55 = arith.addf %53, %54 : vector<8x128xf32>
    %cst_21 = arith.constant 0.000000e+00 : f32
    %56 = vector.broadcast %cst_21 : f32 to vector<8x128xf32>
    %57 = arith.maximumf %55, %56 : vector<8x128xf32>
    %cst_22 = arith.constant dense<0.000000e+00> : vector<8xf32>
    %58 = vector.multi_reduction <add>, %57, %cst_22 [1] : vector<8x128xf32> to vector<8xf32>
    %59 = vector.shape_cast %58 : vector<8xf32> to vector<8x1xf32>
    %cst_23 = arith.constant 1.280000e+02 : f32
    %60 = vector.broadcast %cst_23 : f32 to vector<8x1xf32>
    %61 = arith.divf %59, %60 : vector<8x1xf32>
    %62 = arith.mulf %57, %57 : vector<8x128xf32>
    %cst_24 = arith.constant dense<0.000000e+00> : vector<8xf32>
    %63 = vector.multi_reduction <add>, %62, %cst_24 [1] : vector<8x128xf32> to vector<8xf32>
    %64 = vector.shape_cast %63 : vector<8xf32> to vector<8x1xf32>
    %cst_25 = arith.constant 1.280000e+02 : f32
    %65 = vector.broadcast %cst_25 : f32 to vector<8x1xf32>
    %66 = arith.divf %64, %65 : vector<8x1xf32>
    %67 = vector.broadcast %61 : vector<8x1xf32> to vector<8x128xf32>
    %68 = arith.subf %57, %67 : vector<8x128xf32>
    %69 = arith.mulf %61, %61 : vector<8x1xf32>
    %70 = arith.subf %66, %69 : vector<8x1xf32>
    %cst_26 = arith.constant 9.99999974E-6 : f32
    %71 = vector.broadcast %cst_26 : f32 to vector<8x1xf32>
    %72 = arith.addf %70, %71 : vector<8x1xf32>
    %73 = math.rsqrt %72 : vector<8x1xf32>
    %74 = vector.broadcast %73 : vector<8x1xf32> to vector<8x128xf32>
    %75 = arith.mulf %68, %74 : vector<8x128xf32>
    %76 = vector.broadcast %2 : vector<1x128xf32> to vector<8x128xf32>
    %77 = arith.mulf %75, %76 : vector<8x128xf32>
    %cst_27 = arith.constant dense<0.000000e+00> : vector<8xf32>
    %78 = vector.multi_reduction <add>, %77, %cst_27 [1] : vector<8x128xf32> to vector<8xf32>
    %79 = vector.shape_cast %78 : vector<8xf32> to vector<8x1xf32>
    %80 = vector.broadcast %3 : vector<1x1xf32> to vector<8x1xf32>
    %81 = arith.addf %79, %80 : vector<8x1xf32>
    %82 = arith.index_cast %5 : i32 to index
    %c0_28 = arith.constant 0 : index
    %83 = vector.load %arg5[%82, %c0_28] : memref<8x1xf32, #tpu.memory_space<vmem>>, vector<8x1xf32>
    tpu.vector_store %arg5[%82, %c0_28], %81 {strides = array<i32>} : memref<8x1xf32, #tpu.memory_space<vmem>>, vector<8x1xf32>,
    %c1_i32 = arith.constant 1 : i32
    return
  }
  func.func @transform_0(%arg0: i32) -> (i32, i32) {
    %c0_i32 = arith.constant 0 : i32
    %c0_i32_0 = arith.constant 0 : i32
    return %arg0, %c0_i32 : i32, i32
  }
  func.func @transform_1(%arg0: i32) -> (i32, i32) {
    %c0_i32 = arith.constant 0 : i32
    %c0_i32_0 = arith.constant 0 : i32
    %c0_i32_1 = arith.constant 0 : i32
    return %c0_i32, %c0_i32_0 : i32, i32
  }
  func.func @transform_2(%arg0: i32) -> (i32, i32) {
    %c0_i32 = arith.constant 0 : i32
    %c0_i32_0 = arith.constant 0 : i32
    %c0_i32_1 = arith.constant 0 : i32
    return %c0_i32, %c0_i32_0 : i32, i32
  }
  func.func @transform_3(%arg0: i32) -> (i32, i32) {
    %c0_i32 = arith.constant 0 : i32
    %c0_i32_0 = arith.constant 0 : i32
    %c0_i32_1 = arith.constant 0 : i32
    return %c0_i32, %c0_i32_0 : i32, i32
  }
  func.func @transform_4(%arg0: i32) -> (i32, i32) {
    %c0_i32 = arith.constant 0 : i32
    %c0_i32_0 = arith.constant 0 : i32
    return %arg0, %c0_i32 : i32, i32
  }
}

</mosaic_0001>

<llo_original>
// kernel: critic_forward.1
$region0: #{critic_forward.1}
  #allocation0 [shape = 'u32[]', space=smem, size = 0x4, offset = 0x4, fixed_abs, tag = 'smem constant byte address 0x4 - core index']
  #allocation1 [shape = 'u32[72,128]{1,0:T(1,128)}', space=vmem, size = 0x9000, scoped, tag = 'internal scratch']
  %s0 = inlined_call_operand.hbm [shape: f32[8,32], index: 0, kind: input, shape index: {}]
  %s1 = inlined_call_operand.hbm [shape: f32[8,128], index: 1, kind: input, shape index: {}]
  %s2 = inlined_call_operand.hbm [shape: bf16[32,128], index: 2, kind: input, shape index: {}]
  %s3 = inlined_call_operand.hbm [shape: bf16[128,128], index: 3, kind: input, shape index: {}]
  %s4 = inlined_call_operand.vmem [shape: f32[8,1], index: 4, kind: output, shape index: {}]
  %s5 = sld [smem:[#allocation0]]
  $region42: #{critic_forward.1} parent=0
    _
  %s7 = ssub.s32 1, %s5
  %s8 = scalar_select 0, %s7, %s5
  $region1: #{critic_forward.1} parent=0
    #allocation2 [shape = 'u8[4096]{0}', space=vmem, size = 0x1000, scoped, tag = 'input window, operand 0, single buffered']
    #allocation3 [shape = 's32[1]{0}', space=sflag, size = 0x4, scoped, tag = 'scoped memory for critic_forward.1']
    #allocation4 [shape = 'u8[4096]{0}', space=vmem, size = 0x1000, scoped, tag = 'input window, operand 1, single buffered']
    #allocation5 [shape = 's32[1]{0}', space=sflag, size = 0x4, scoped, tag = 'scoped memory for critic_forward.1']
    #allocation6 [shape = 'u8[8192]{0}', space=vmem, size = 0x2000, scoped, tag = 'input window, operand 2, single buffered']
    #allocation7 [shape = 'u8[32768]{0}', space=vmem, size = 0x8000, scoped, tag = 'input window, operand 3, single buffered']
    #allocation8 [shape = 's32[1]{0}', space=sflag, size = 0x4, scoped, tag = 'scoped memory for critic_forward.1']
    %9 = vsyncpa [#allocation3], 0
    %10 = vsyncpa [#allocation5], 0
    %11 = vsyncpa [#allocation8], 0
    // Predicated region
    $region2: #{critic_forward.1} parent=1 // pred_check
      _
    $region3: #{critic_forward.1} parent=1 // pred_check_branch
      %13 = sbr.rel (0) target = $region5
    $region4: #{critic_forward.1} parent=1 // pred_region
      %15 = vsyncadd [#allocation3], 0
      %s17 = sshll.u32 %s0, 4
      %s18 = int_to_ptr.hbm [resolvable:$true] %s17
      %s19 = sshll.u32 [#allocation2], 4
      %s20 = int_to_ptr.vmem [resolvable:$true] %s19
      %22 = dma.hbm_to_vmem [thread:$0]  %s18, 128, %s20, [#allocation3]
    $region5: #{critic_forward.1} parent=1 // pred_fallthru
      _
    // Predicated region
    $region6: #{critic_forward.1} parent=1 // pred_check
      _
    $region7: #{critic_forward.1} parent=1 // pred_check_branch
      %24 = sbr.rel (0) target = $region9
    $region8: #{critic_forward.1} parent=1 // pred_region
      %26 = vsyncadd [#allocation5], 0
      %s28 = sshll.u32 %s1, 4
      %s29 = int_to_ptr.hbm [resolvable:$true] %s28
      %s30 = sshll.u32 [#allocation4], 4
      %s31 = int_to_ptr.vmem [resolvable:$true] %s30
      %33 = dma.hbm_to_vmem [thread:$0]  %s29, 128, %s31, [#allocation5]
    $region9: #{critic_forward.1} parent=1 // pred_fallthru
      _
    // Predicated region
    $region10: #{critic_forward.1} parent=1 // pred_check
      _
    $region11: #{critic_forward.1} parent=1 // pred_check_branch
      %35 = sbr.rel (0) target = $region13
    $region12: #{critic_forward.1} parent=1 // pred_region
      %37 = vsyncadd [#allocation5], 0
      %s38 = sshll.u32 %s2, 4
      %s39 = int_to_ptr.hbm [resolvable:$true] %s38
      %s40 = sshll.u32 [#allocation6], 4
      %s41 = int_to_ptr.vmem [resolvable:$true] %s40
      %46 = dma.hbm_to_vmem [thread:$0]  %s39, 256, %s41, [#allocation5], 64, 64, 4
    $region13: #{critic_forward.1} parent=1 // pred_fallthru
      _
    // Predicated region
    $region14: #{critic_forward.1} parent=1 // pred_check
      _
    $region15: #{critic_forward.1} parent=1 // pred_check_branch
      %48 = sbr.rel (0) target = $region17
    $region16: #{critic_forward.1} parent=1 // pred_region
      %50 = vsyncadd [#allocation8], 0
      %s51 = sshll.u32 %s3, 4
      %s52 = int_to_ptr.hbm [resolvable:$true] %s51
      %s53 = sshll.u32 [#allocation7], 4
      %s54 = int_to_ptr.vmem [resolvable:$true] %s53
      %59 = dma.hbm_to_vmem [thread:$0]  %s52, 1024, %s54, [#allocation8], 64, 64, 4
    $region17: #{critic_forward.1} parent=1 // pred_fallthru
      _
    // Predicated region
    $region18: #{critic_forward.1} parent=1 // pred_check
      _
    $region19: #{critic_forward.1} parent=1 // pred_check_branch
      %61 = sbr.rel (0) target = $region21
    $region20: #{critic_forward.1} parent=1 // pred_region
      %63 = dma.done [#allocation3], 128
    $region21: #{critic_forward.1} parent=1 // pred_fallthru
      _
    // Predicated region
    $region22: #{critic_forward.1} parent=1 // pred_check
      _
    $region23: #{critic_forward.1} parent=1 // pred_check_branch
      %65 = sbr.rel (0) target = $region25
    $region24: #{critic_forward.1} parent=1 // pred_region
      %67 = dma.done [#allocation5], 128
    $region25: #{critic_forward.1} parent=1 // pred_fallthru
      _
    // Predicated region
    $region26: #{critic_forward.1} parent=1 // pred_check
      _
    $region27: #{critic_forward.1} parent=1 // pred_check_branch
      %69 = sbr.rel (0) target = $region29
    $region28: #{critic_forward.1} parent=1 // pred_region
      %71 = dma.done [#allocation5], 256
    $region29: #{critic_forward.1} parent=1 // pred_fallthru
      _
    // Predicated region
    $region30: #{critic_forward.1} parent=1 // pred_check
      _
    $region31: #{critic_forward.1} parent=1 // pred_check_branch
      %73 = sbr.rel (0) target = $region33
    $region32: #{critic_forward.1} parent=1 // pred_region
      %75 = dma.done [#allocation8], 1024
    $region33: #{critic_forward.1} parent=1 // pred_fallthru
      _
    %v77 = vld [vmem:[#allocation4] sm:$0x1]
    %v78 = vld [vmem:[#allocation4 + $0x1] sm:$0x1]
    %v79 = vld [vmem:[#allocation4 + $0x2] sm:$0x1]
    %v80 = vld [vmem:[#allocation4 + $0x3] sm:$0x1]
    %v81 = vld [vmem:[#allocation2] sm:$0xff]
    %vm82 = vcmask 261120
    %v83 = vsel %vm82, %v81, 0.0
    %84 = vadd.xlane.f32.xlu0 %v83
    %v85 = vpop.xlane.xlu0 %84
    %v86 = vrcp.pop 32.0
    %v87 = vmul.f32 32.0, %v86
    %v88 = vsub.f32 1.0, %v87
    %v89 = vmul.f32 %v86, %v88
    %v90 = vadd.f32 %v86, %v89
    %vm91 = vweird.f32 %v86
    %v92 = vsel %vm91, %v86, %v90
    %v93 = vmul.f32 %v85, %v92
    %v94 = vmul.f32 %v81, %v81
    %v95 = vsel %vm82, %v94, 0.0
    %96 = vadd.xlane.f32.xlu0 %v95
    %v97 = vpop.xlane.xlu0 %96
    %v98 = vmul.f32 %v97, %v92
    %v99 = vsub.f32 %v81, %v93
    %v100 = vmul.f32 %v93, %v93
    %v101 = vsub.f32 %v98, %v100
    %v102 = vadd.f32 %v101, 1e-05
    %v103 = vrsqrt.pop %v102
    %v104 = vmul.f32 %v103, %v102
    %v105 = vmul.f32 %v104, %v103
    %v106 = vmul.f32 0.5, %v105
    %v107 = vsub.f32 1.5, %v106
    %v108 = vmul.f32 %v103, %v107
    %vm109 = vweird.f32 %v102
    %vm110 = vweird.f32 %v103
    %vm111 = vmor %vm109, %vm110
    %v112 = vsel %vm111, %v103, %v108
    %v113 = vmul.f32 %v99, %v112
    %v114 = vpack.c.bf16 %v113, %v113
    %v115 = vld [vmem:[#allocation6] sm:$0xf]
    %v116 = vld [vmem:[#allocation6 + $0x4] sm:$0xf]
    %v117 = vld [vmem:[#allocation6 + $0x8] sm:$0xf]
    %v118 = vld [vmem:[#allocation6 + $0xc] sm:$0xf]
    %v119 = vperm.slane %v77, 0
    %v124 = vunpack.c.l.b16 %v115
    %v125 = vunpack.c.l.b16 %v116
    %v126 = vunpack.c.l.b16 %v117
    %v127 = vunpack.c.l.b16 %v118
    %v128 = vpack.c.b16 %v125, %v124
    %v129 = vpack.c.b16 %v127, %v126
    %v133 = vsel %vm82, %v114, 0
    %135 = vmatpush.bf16.msra.mxu0 0
    %136 = vmatpush.bf16.msra.mxu0 0
    %137 = vmatpush.bf16.msra.mxu0 0
    %138 = vmatpush.bf16.msra.mxu0 0
    %139 = vmatpush.bf16.msra.mxu0 0
    %140 = vmatpush.bf16.msra.mxu0 0
    %141 = vmatpush.bf16.msra.mxu0 %v129
    %142 = vmatpush.bf16.msra.mxu0 %v128
    %143 = vmatmul.bf16.gmra.mxu0 %v133
    %v144 = vpop.f32.mrf.mxu0
    %v145 = vadd.f32 %v119, %v144
    %v146 = vpop.f32.mrf.mxu0
    %147 = vdwg.mxu0
    %v148 = vmax.f32 %v145, 0.0
    %149 = vadd.xlane.f32.xlu0 %v148
    %v150 = vpop.xlane.xlu0 %149
    %v151 = vrcp.pop 128.0
    %v152 = vmul.f32 128.0, %v151
    %v153 = vsub.f32 1.0, %v152
    %v154 = vmul.f32 %v151, %v153
    %v155 = vadd.f32 %v151, %v154
    %vm156 = vweird.f32 %v151
    %v157 = vsel %vm156, %v151, %v155
    %v158 = vmul.f32 %v150, %v157
    %v159 = vmul.f32 %v148, %v148
    %160 = vadd.xlane.f32.xlu0 %v159
    %v161 = vpop.xlane.xlu0 %160
    %v162 = vmul.f32 %v161, %v157
    %v163 = vsub.f32 %v148, %v158
    %v164 = vmul.f32 %v158, %v158
    %v165 = vsub.f32 %v162, %v164
    %v166 = vadd.f32 %v165, 1e-05
    %v167 = vrsqrt.pop %v166
    %v168 = vmul.f32 %v167, %v166
    %v169 = vmul.f32 %v168, %v167
    %v170 = vmul.f32 0.5, %v169
    %v171 = vsub.f32 1.5, %v170
    %v172 = vmul.f32 %v167, %v171
    %vm173 = vweird.f32 %v166
    %vm174 = vweird.f32 %v167
    %vm175 = vmor %vm173, %vm174
    %v176 = vsel %vm175, %v167, %v172
    %v177 = vmul.f32 %v163, %v176
    %v178 = vpack.c.bf16 %v177, %v177
    %v179 = vld [vmem:[#allocation7] sm:$0xf]
    %v180 = vld [vmem:[#allocation7 + $0x4] sm:$0xf]
    %v181 = vld [vmem:[#allocation7 + $0x8] sm:$0xf]
    %v182 = vld [vmem:[#allocation7 + $0xc] sm:$0xf]
    %v183 = vld [vmem:[#allocation7 + $0x10] sm:$0xf]
    %v184 = vld [vmem:[#allocation7 + $0x14] sm:$0xf]
    %v185 = vld [vmem:[#allocation7 + $0x18] sm:$0xf]
    %v186 = vld [vmem:[#allocation7 + $0x1c] sm:$0xf]
    %v187 = vld [vmem:[#allocation7 + $0x20] sm:$0xf]
    %v188 = vld [vmem:[#allocation7 + $0x24] sm:$0xf]
    %v189 = vld [vmem:[#allocation7 + $0x28] sm:$0xf]
    %v190 = vld [vmem:[#allocation7 + $0x2c] sm:$0xf]
    %v191 = vld [vmem:[#allocation7 + $0x30] sm:$0xf]
    %v192 = vld [vmem:[#allocation7 + $0x34] sm:$0xf]
    %v193 = vld [vmem:[#allocation7 + $0x38] sm:$0xf]
    %v194 = vld [vmem:[#allocation7 + $0x3c] sm:$0xf]
    %v195 = vperm.slane %v78, 0
    %v212 = vunpack.c.l.b16 %v179
    %v213 = vunpack.c.l.b16 %v180
    %v214 = vunpack.c.l.b16 %v181
    %v215 = vunpack.c.l.b16 %v182
    %v216 = vunpack.c.l.b16 %v183
    %v217 = vunpack.c.l.b16 %v184
    %v218 = vunpack.c.l.b16 %v185
    %v219 = vunpack.c.l.b16 %v186
    %v220 = vunpack.c.l.b16 %v187
    %v221 = vunpack.c.l.b16 %v188
    %v222 = vunpack.c.l.b16 %v189
    %v223 = vunpack.c.l.b16 %v190
    %v224 = vunpack.c.l.b16 %v191
    %v225 = vunpack.c.l.b16 %v192
    %v226 = vunpack.c.l.b16 %v193
    %v227 = vunpack.c.l.b16 %v194
    %v228 = vpack.c.b16 %v213, %v212
    %v229 = vpack.c.b16 %v215, %v214
    %v230 = vpack.c.b16 %v217, %v216
    %v231 = vpack.c.b16 %v219, %v218
    %v232 = vpack.c.b16 %v221, %v220
    %v233 = vpack.c.b16 %v223, %v222
    %v234 = vpack.c.b16 %v225, %v224
    %v235 = vpack.c.b16 %v227, %v226
    %244 = vmatpush.bf16.msra.mxu0 %v235
    %245 = vmatpush.bf16.msra.mxu0 %v234
    %246 = vmatpush.bf16.msra.mxu0 %v233
    %247 = vmatpush.bf16.msra.mxu0 %v232
    %248 = vmatpush.bf16.msra.mxu0 %v231
    %249 = vmatpush.bf16.msra.mxu0 %v230
    %250 = vmatpush.bf16.msra.mxu0 %v229
    %251 = vmatpush.bf16.msra.mxu0 %v228
    %252 = vmatmul.bf16.gmra.mxu0 %v178
    %v253 = vpop.f32.mrf.mxu0
    %v254 = vadd.f32 %v195, %v253
    %v255 = vpop.f32.mrf.mxu0
    %256 = vdwg.mxu0
    %v257 = vmax.f32 %v254, 0.0
    %258 = vadd.xlane.f32.xlu0 %v257
    %v259 = vpop.xlane.xlu0 %258
    %v260 = vmul.f32 %v259, %v157
    %v261 = vmul.f32 %v257, %v257
    %262 = vadd.xlane.f32.xlu0 %v261
    %v263 = vpop.xlane.xlu0 %262
    %v264 = vmul.f32 %v263, %v157
    %v265 = vsub.f32 %v257, %v260
    %v266 = vmul.f32 %v260, %v260
    %v267 = vsub.f32 %v264, %v266
    %v268 = vadd.f32 %v267, 1e-05
    %v269 = vrsqrt.pop %v268
    %v270 = vmul.f32 %v269, %v268
    %v271 = vmul.f32 %v270, %v269
    %v272 = vmul.f32 0.5, %v271
    %v273 = vsub.f32 1.5, %v272
    %v274 = vmul.f32 %v269, %v273
    %vm275 = vweird.f32 %v268
    %vm276 = vweird.f32 %v269
    %vm277 = vmor %vm275, %vm276
    %v278 = vsel %vm277, %v269, %v274
    %v279 = vmul.f32 %v265, %v278
    %v280 = vperm.slane %v79, 0
    %v281 = vmul.f32 %v279, %v280
    %282 = vadd.xlane.f32.xlu0 %v281
    %v283 = vpop.xlane.xlu0 %282
    %v284 = vperm.slane %v80, 0
    %v285 = vadd.f32 %v283, %v284
    %vm286 = vcmask 7168
    %287 = vst.msk [vmem:[%s4] sm:$0xff] %vm286, %v285
    // Predicated region
    $region34: #{critic_forward.1} parent=1 // pred_check
      _
    $region35: #{critic_forward.1} parent=1 // pred_check_branch
      %289 = sbr.rel (0) target = $region37
    $region36: #{critic_forward.1} parent=1 // pred_region
      _
    $region37: #{critic_forward.1} parent=1 // pred_fallthru
      _
    // Predicated region
    $region38: #{critic_forward.1} parent=1 // pred_check
      _
    $region39: #{critic_forward.1} parent=1 // pred_check_branch
      %291 = sbr.rel (0) target = $region41
    $region40: #{critic_forward.1} parent=1 // pred_region
      _
    $region41: #{critic_forward.1} parent=1 // pred_fallthru
      _
    %292 = vsyncpa [#allocation3], 1
    %293 = vsyncpa [#allocation5], 1
    %294 = vsyncpa [#allocation8], 1

</llo_original>
